<compile_context>
chip_gen: v6e
topology: v6e:2x2x1
jax: 0.10.0
libtpu: 0.0.40
codegen_flags: <defaults>
</compile_context>

<pallas_src>
import functools

import jax
import jax.numpy as jnp
from jax.experimental import pallas as pl
from jax.experimental.pallas import tpu as pltpu

IN_DIM = 28 * 28
H1, H2, H3, OUT = 128, 64, 16, 10

# Batch tile: double-buffered bf16 x tiles (2 x 1024 x 896(lane-padded) x 2B ~= 3.7 MB) plus
# ~0.4 MB resident bf16 weights plus f32 temporaries fit comfortably inside the scoped VMEM
# limit on every generation (v5e 16->32 MiB raised below, v6e 32 MiB, v7x 32 MiB).
DEFAULT_TILE_B = 1024


def net1_kernel(x_ref, w1_ref, b1_ref, w2_ref, b2_ref, w3_ref, b3_ref,
                w4_ref, b4_ref, o_ref):
    """One batch tile: fused 4-layer MLP + log_softmax.

    x_ref: (TILE_B, 784) bf16; weights bf16 (in, out); biases f32 (1, out); o_ref (TILE_B, 10) f32.
    """
    x = x_ref[...]                                                       # (TILE_B, 784) bf16

    # fc1 + ReLU  (bf16 MXU inputs, f32 accumulate, f32 elementwise)
    h = jnp.dot(x, w1_ref[...], preferred_element_type=jnp.float32) + b1_ref[...]
    h = jnp.maximum(h, 0.0)                                              # (TILE_B, 128) f32

    # fc2 + ReLU
    h = jnp.dot(h.astype(jnp.bfloat16), w2_ref[...],
                preferred_element_type=jnp.float32) + b2_ref[...]
    h = jnp.maximum(h, 0.0)                                              # (TILE_B, 64) f32

    # fc3 + ReLU
    h = jnp.dot(h.astype(jnp.bfloat16), w3_ref[...],
                preferred_element_type=jnp.float32) + b3_ref[...]
    h = jnp.maximum(h, 0.0)                                              # (TILE_B, 16) f32

    # fc4
    logits = jnp.dot(h.astype(jnp.bfloat16), w4_ref[...],
                     preferred_element_type=jnp.float32) + b4_ref[...]   # (TILE_B, 10) f32

    # Numerically stable log_softmax over the last axis (matches F.log_softmax on 2-D input).
    m = jnp.max(logits, axis=-1, keepdims=True)
    shifted = logits - m
    lse = jnp.log(jnp.sum(jnp.exp(shifted), axis=-1, keepdims=True))
    o_ref[...] = shifted - lse


def _round_up(n: int, m: int) -> int:
    return ((n + m - 1) // m) * m


@functools.partial(jax.jit, static_argnames=("tile_b",))
def net1_forward(x_nchw, params, tile_b: int = DEFAULT_TILE_B):
    """x_nchw: (B, 1, 28, 28) float32 -> (B, 10) float32 log-probabilities."""
    b = x_nchw.shape[0]
    # Flatten like x.view(x.size(0), -1); cast the streamed input to bf16 (halves HBM bytes).
    x2d = x_nchw.reshape(b, -1).astype(jnp.bfloat16)                     # (B, 784)

    (w1, b1), (w2, b2), (w3, b3), (w4, b4) = params
    w1, w2, w3, w4 = (w.astype(jnp.bfloat16) for w in (w1, w2, w3, w4))
    b1, b2, b3, b4 = (bb.astype(jnp.float32) for bb in (b1, b2, b3, b4))

    # Pick a batch tile: never larger than needed, multiple of 8 (sublane granularity).
    tile_b = min(tile_b, _round_up(b, 8))
    b_pad = _round_up(b, tile_b)
    if b_pad != b:
        x2d = jnp.pad(x2d, ((0, b_pad - b), (0, 0)))
    grid = (b_pad // tile_b,)

    # x / out march over the batch; weights & biases keep block index (0, 0) so they are
    # loaded once and stay resident in VMEM across all grid steps.
    x_spec = pl.BlockSpec((tile_b, IN_DIM), lambda i: (i, 0))
    out_spec = pl.BlockSpec((tile_b, OUT), lambda i: (i, 0))

    def resident(shape):
        return pl.BlockSpec(shape, lambda i: (0, 0))

    in_specs = [
        x_spec,
        resident((IN_DIM, H1)), resident((1, H1)),
        resident((H1, H2)),     resident((1, H2)),
        resident((H2, H3)),     resident((1, H3)),
        resident((H3, OUT)),    resident((1, OUT)),
    ]

    weight_elems = IN_DIM * H1 + H1 * H2 + H2 * H3 + H3 * OUT
    cost = pl.CostEstimate(
        flops=2 * b_pad * weight_elems,
        transcendentals=b_pad * OUT,                       # exp in the softmax
        bytes_accessed=(b_pad * IN_DIM * 2                 # bf16 input stream
                        + b_pad * OUT * 4                  # f32 output
                        + weight_elems * 2                 # bf16 weights
                        + (H1 + H2 + H3 + OUT) * 4),       # f32 biases
    )

    out = pl.pallas_call(
        net1_kernel,
        out_shape=jax.ShapeDtypeStruct((b_pad, OUT), jnp.float32),
        grid=grid,
        in_specs=in_specs,
        out_specs=out_spec,
        compiler_params=pltpu.CompilerParams(
            dimension_semantics=("parallel",),             # batch axis: megacore-shardable
            vmem_limit_bytes=32 * 1024 * 1024,             # headroom for double-buffered tiles (v5e)
        ),
        cost_estimate=cost,
    )(x2d, w1, b1, w2, b2, w3, b3, w4, b4)

    return out[:b]


def init_params(key):
    """Deterministic init mimicking nn.Linear default (uniform +/- 1/sqrt(fan_in)).

    Weights in (in, out) layout, biases as (1, out) rows, all f32 (cast handled in wrapper).
    """
    dims = [(IN_DIM, H1), (H1, H2), (H2, H3), (H3, OUT)]
    params = []
    for (fan_in, fan_out) in dims:
        key, kw, kb = jax.random.split(key, 3)
        bound = 1.0 / jnp.sqrt(jnp.float32(fan_in))
        w = jax.random.uniform(kw, (fan_in, fan_out), jnp.float32, -bound, bound)
        bb = jax.random.uniform(kb, (1, fan_out), jnp.float32, -bound, bound)
        params.append((w, bb))
    return tuple(params)


def net1_reference(x_nchw, params):
    """Plain-JAX reference using the same bf16-input / f32-accumulate recipe as the kernel."""
    x = x_nchw.reshape(x_nchw.shape[0], -1).astype(jnp.bfloat16)
    (w1, b1), (w2, b2), (w3, b3), (w4, b4) = params

    def dense(h, w, bb):
        return jnp.dot(h.astype(jnp.bfloat16), w.astype(jnp.bfloat16),
                       preferred_element_type=jnp.float32) + bb.astype(jnp.float32)

    h = jax.nn.relu(dense(x, w1, b1))
    h = jax.nn.relu(dense(h, w2, b2))
    h = jax.nn.relu(dense(h, w3, b3))
    logits = dense(h, w4, b4)
    return jax.nn.log_softmax(logits, axis=-1)


if __name__ == "__main__":
    key = jax.random.PRNGKey(0)
    key, kx = jax.random.split(key)

    # Small MNIST-like batch: (B, C, H, W) = (2, 1, 28, 28), NCHW like PyTorch.
    x = jax.random.normal(kx, (2, 1, 28, 28), dtype=jnp.float32)
    params = init_params(key)

    out = net1_forward(x, params)
    out = jax.block_until_ready(out)

    ref = net1_reference(x, params)
    assert out.shape == (2, 10)
    # Log-probabilities sanity: each row sums to ~1 in prob space.
    assert jnp.allclose(jnp.sum(jnp.exp(out), axis=-1), 1.0, atol=1e-3)
    assert jnp.allclose(out, ref, atol=2e-3, rtol=2e-3), "mismatch vs reference"

    print("KERNEL_OK")
</pallas_src>

<mosaic_0001>
module attributes {stable_mosaic.version = 11 : i64} {
  func.func @net1_kernel(%arg0: i32, %arg1: memref<8x784xbf16, #tpu.memory_space<vmem>>, %arg2: memref<784x128xbf16, #tpu.memory_space<vmem>>, %arg3: memref<1x128xf32, #tpu.memory_space<vmem>>, %arg4: memref<128x64xbf16, #tpu.memory_space<vmem>>, %arg5: memref<1x64xf32, #tpu.memory_space<vmem>>, %arg6: memref<64x16xbf16, #tpu.memory_space<vmem>>, %arg7: memref<1x16xf32, #tpu.memory_space<vmem>>, %arg8: memref<16x10xbf16, #tpu.memory_space<vmem>>, %arg9: memref<1x10xf32, #tpu.memory_space<vmem>>, %arg10: memref<8x10xf32, #tpu.memory_space<vmem>>) attributes {dimension_semantics = [#tpu.dimension_semantics<parallel>], iteration_bounds = array<i64: 1>, scalar_prefetch = 0 : i64, scratch_operands = 0 : i64, tpu.core_type = #tpu.core_type<tc>, window_params = [{transform_indices = @transform_0, window_bounds = array<i64: 8, 784>}, {pipeline_mode = #tpu.pipeline_mode<synchronous>, transform_indices = @transform_1, window_bounds = array<i64: 784, 128>}, {pipeline_mode = #tpu.pipeline_mode<synchronous>, transform_indices = @transform_2, window_bounds = array<i64: 1, 128>}, {pipeline_mode = #tpu.pipeline_mode<synchronous>, transform_indices = @transform_3, window_bounds = array<i64: 128, 64>}, {pipeline_mode = #tpu.pipeline_mode<synchronous>, transform_indices = @transform_4, window_bounds = array<i64: 1, 64>}, {pipeline_mode = #tpu.pipeline_mode<synchronous>, transform_indices = @transform_5, window_bounds = array<i64: 64, 16>}, {pipeline_mode = #tpu.pipeline_mode<synchronous>, transform_indices = @transform_6, window_bounds = array<i64: 1, 16>}, {pipeline_mode = #tpu.pipeline_mode<synchronous>, transform_indices = @transform_7, window_bounds = array<i64: 16, 10>}, {pipeline_mode = #tpu.pipeline_mode<synchronous>, transform_indices = @transform_8, window_bounds = array<i64: 1, 10>}, {transform_indices = @transform_9, window_bounds = array<i64: 8, 10>}]} {
    %c0 = arith.constant 0 : index
    %c0_0 = arith.constant 0 : index
    %0 = vector.load %arg1[%c0, %c0_0] : memref<8x784xbf16, #tpu.memory_space<vmem>>, vector<8x784xbf16>
    %c0_1 = arith.constant 0 : index
    %c0_2 = arith.constant 0 : index
    %1 = vector.load %arg2[%c0_1, %c0_2] : memref<784x128xbf16, #tpu.memory_space<vmem>>, vector<784x128xbf16>
    %cst = arith.constant dense<0.000000e+00> : vector<8x128xf32>
    %2 = tpu.matmul %0, %1, %cst {dimension_numbers = #tpu.dot_dimension_numbers<[1], [0], [0], [1], [0, 0, 1, 1], [], []>} : vector<8x784xbf16>, vector<784x128xbf16>, vector<8x128xf32> -> vector<8x128xf32>
    %c0_3 = arith.constant 0 : index
    %c0_4 = arith.constant 0 : index
    %3 = vector.load %arg3[%c0_3, %c0_4] : memref<1x128xf32, #tpu.memory_space<vmem>>, vector<1x128xf32>
    %4 = vector.broadcast %3 : vector<1x128xf32> to vector<8x128xf32>
    %5 = arith.addf %2, %4 : vector<8x128xf32>
    %cst_5 = arith.constant 0.000000e+00 : f32
    %6 = vector.broadcast %cst_5 : f32 to vector<8x128xf32>
    %7 = arith.maximumf %5, %6 : vector<8x128xf32>
    %8 = arith.truncf %7 : vector<8x128xf32> to vector<8x128xbf16>
    %c0_6 = arith.constant 0 : index
    %c0_7 = arith.constant 0 : index
    %9 = vector.load %arg4[%c0_6, %c0_7] : memref<128x64xbf16, #tpu.memory_space<vmem>>, vector<128x64xbf16>
    %cst_8 = arith.constant dense<0.000000e+00> : vector<8x64xf32>
    %10 = tpu.matmul %8, %9, %cst_8 {dimension_numbers = #tpu.dot_dimension_numbers<[1], [0], [0], [1], [0, 0, 1, 1], [], []>} : vector<8x128xbf16>, vector<128x64xbf16>, vector<8x64xf32> -> vector<8x64xf32>
    %c0_9 = arith.constant 0 : index
    %c0_10 = arith.constant 0 : index
    %11 = vector.load %arg5[%c0_9, %c0_10] : memref<1x64xf32, #tpu.memory_space<vmem>>, vector<1x64xf32>
    %12 = vector.broadcast %11 : vector<1x64xf32> to vector<8x64xf32>
    %13 = arith.addf %10, %12 : vector<8x64xf32>
    %cst_11 = arith.constant 0.000000e+00 : f32
    %14 = vector.broadcast %cst_11 : f32 to vector<8x64xf32>
    %15 = arith.maximumf %13, %14 : vector<8x64xf32>
    %16 = arith.truncf %15 : vector<8x64xf32> to vector<8x64xbf16>
    %c0_12 = arith.constant 0 : index
    %c0_13 = arith.constant 0 : index
    %17 = vector.load %arg6[%c0_12, %c0_13] : memref<64x16xbf16, #tpu.memory_space<vmem>>, vector<64x16xbf16>
    %cst_14 = arith.constant dense<0.000000e+00> : vector<8x16xf32>
    %18 = tpu.matmul %16, %17, %cst_14 {dimension_numbers = #tpu.dot_dimension_numbers<[1], [0], [0], [1], [0, 0, 1, 1], [], []>} : vector<8x64xbf16>, vector<64x16xbf16>, vector<8x16xf32> -> vector<8x16xf32>
    %c0_15 = arith.constant 0 : index
    %c0_16 = arith.constant 0 : index
    %19 = vector.load %arg7[%c0_15, %c0_16] : memref<1x16xf32, #tpu.memory_space<vmem>>, vector<1x16xf32>
    %20 = vector.broadcast %19 : vector<1x16xf32> to vector<8x16xf32>
    %21 = arith.addf %18, %20 : vector<8x16xf32>
    %cst_17 = arith.constant 0.000000e+00 : f32
    %22 = vector.broadcast %cst_17 : f32 to vector<8x16xf32>
    %23 = arith.maximumf %21, %22 : vector<8x16xf32>
    %24 = arith.truncf %23 : vector<8x16xf32> to vector<8x16xbf16>
    %c0_18 = arith.constant 0 : index
    %c0_19 = arith.constant 0 : index
    %25 = vector.load %arg8[%c0_18, %c0_19] : memref<16x10xbf16, #tpu.memory_space<vmem>>, vector<16x10xbf16>
    %cst_20 = arith.constant dense<0.000000e+00> : vector<8x10xf32>
    %26 = tpu.matmul %24, %25, %cst_20 {dimension_numbers = #tpu.dot_dimension_numbers<[1], [0], [0], [1], [0, 0, 1, 1], [], []>} : vector<8x16xbf16>, vector<16x10xbf16>, vector<8x10xf32> -> vector<8x10xf32>
    %c0_21 = arith.constant 0 : index
    %c0_22 = arith.constant 0 : index
    %27 = vector.load %arg9[%c0_21, %c0_22] : memref<1x10xf32, #tpu.memory_space<vmem>>, vector<1x10xf32>
    %28 = vector.broadcast %27 : vector<1x10xf32> to vector<8x10xf32>
    %29 = arith.addf %26, %28 : vector<8x10xf32>
    %cst_23 = arith.constant dense<0xFF800000> : vector<8xf32>
    %30 = vector.multi_reduction <maximumf>, %29, %cst_23 [1] : vector<8x10xf32> to vector<8xf32>
    %31 = vector.shape_cast %30 : vector<8xf32> to vector<8x1xf32>
    %32 = vector.broadcast %31 : vector<8x1xf32> to vector<8x10xf32>
    %33 = arith.subf %29, %32 : vector<8x10xf32>
    %34 = math.exp %33 : vector<8x10xf32>
    %cst_24 = arith.constant dense<0.000000e+00> : vector<8xf32>
    %35 = vector.multi_reduction <add>, %34, %cst_24 [1] : vector<8x10xf32> to vector<8xf32>
    %36 = vector.shape_cast %35 : vector<8xf32> to vector<8x1xf32>
    %37 = math.log %36 : vector<8x1xf32>
    %38 = vector.broadcast %37 : vector<8x1xf32> to vector<8x10xf32>
    %39 = arith.subf %33, %38 : vector<8x10xf32>
    %c0_25 = arith.constant 0 : index
    %c0_26 = arith.constant 0 : index
    %40 = vector.load %arg10[%c0_25, %c0_26] : memref<8x10xf32, #tpu.memory_space<vmem>>, vector<8x10xf32>
    tpu.vector_store %arg10[%c0_25, %c0_26], %39 {strides = array<i32>} : memref<8x10xf32, #tpu.memory_space<vmem>>, vector<8x10xf32>,
    return
  }
  func.func @transform_0(%arg0: i32) -> (i32, i32) {
    %c0_i32 = arith.constant 0 : i32
    %c0_i32_0 = arith.constant 0 : i32
    return %arg0, %c0_i32 : i32, i32
  }
  func.func @transform_1(%arg0: i32) -> (i32, i32) {
    %c0_i32 = arith.constant 0 : i32
    %c0_i32_0 = arith.constant 0 : i32
    %c0_i32_1 = arith.constant 0 : i32
    return %c0_i32, %c0_i32_0 : i32, i32
  }
  func.func @transform_2(%arg0: i32) -> (i32, i32) {
    %c0_i32 = arith.constant 0 : i32
    %c0_i32_0 = arith.constant 0 : i32
    %c0_i32_1 = arith.constant 0 : i32
    return %c0_i32, %c0_i32_0 : i32, i32
  }
  func.func @transform_3(%arg0: i32) -> (i32, i32) {
    %c0_i32 = arith.constant 0 : i32
    %c0_i32_0 = arith.constant 0 : i32
    %c0_i32_1 = arith.constant 0 : i32
    return %c0_i32, %c0_i32_0 : i32, i32
  }
  func.func @transform_4(%arg0: i32) -> (i32, i32) {
    %c0_i32 = arith.constant 0 : i32
    %c0_i32_0 = arith.constant 0 : i32
    %c0_i32_1 = arith.constant 0 : i32
    return %c0_i32, %c0_i32_0 : i32, i32
  }
  func.func @transform_5(%arg0: i32) -> (i32, i32) {
    %c0_i32 = arith.constant 0 : i32
    %c0_i32_0 = arith.constant 0 : i32
    %c0_i32_1 = arith.constant 0 : i32
    return %c0_i32, %c0_i32_0 : i32, i32
  }
  func.func @transform_6(%arg0: i32) -> (i32, i32) {
    %c0_i32 = arith.constant 0 : i32
    %c0_i32_0 = arith.constant 0 : i32
    %c0_i32_1 = arith.constant 0 : i32
    return %c0_i32, %c0_i32_0 : i32, i32
  }
  func.func @transform_7(%arg0: i32) -> (i32, i32) {
    %c0_i32 = arith.constant 0 : i32
    %c0_i32_0 = arith.constant 0 : i32
    %c0_i32_1 = arith.constant 0 : i32
    return %c0_i32, %c0_i32_0 : i32, i32
  }
  func.func @transform_8(%arg0: i32) -> (i32, i32) {
    %c0_i32 = arith.constant 0 : i32
    %c0_i32_0 = arith.constant 0 : i32
    %c0_i32_1 = arith.constant 0 : i32
    return %c0_i32, %c0_i32_0 : i32, i32
  }
  func.func @transform_9(%arg0: i32) -> (i32, i32) {
    %c0_i32 = arith.constant 0 : i32
    %c0_i32_0 = arith.constant 0 : i32
    return %arg0, %c0_i32 : i32, i32
  }
}

</mosaic_0001>

<llo_original>
// kernel: net1_forward.1
$region0: #{net1_forward.1}
  #allocation0 [shape = 'u32[]', space=smem, size = 0x4, offset = 0x4, fixed_abs, tag = 'smem constant byte address 0x4 - core index']
  #allocation1 [shape = 'u32[144,128]{1,0:T(1,128)}', space=vmem, size = 0x12000, scoped, tag = 'internal scratch']
  %s0 = inlined_call_operand.vmem [shape: bf16[8,784], index: 0, kind: input, shape index: {}]
  %s1 = inlined_call_operand.vmem [shape: bf16[784,128], index: 1, kind: input, shape index: {}]
  %s2 = inlined_call_operand.vmem [shape: f32[1,128], index: 2, kind: input, shape index: {}]
  %s3 = inlined_call_operand.vmem [shape: bf16[128,64], index: 3, kind: input, shape index: {}]
  %s4 = inlined_call_operand.vmem [shape: f32[1,64], index: 4, kind: input, shape index: {}]
  %s5 = inlined_call_operand.vmem [shape: bf16[64,16], index: 5, kind: input, shape index: {}]
  %s6 = inlined_call_operand.vmem [shape: f32[1,16], index: 6, kind: input, shape index: {}]
  %s7 = inlined_call_operand.vmem [shape: bf16[16,10], index: 7, kind: input, shape index: {}]
  %s8 = inlined_call_operand.vmem [shape: f32[1,10], index: 8, kind: input, shape index: {}]
  %s9 = inlined_call_operand.vmem [shape: f32[8,10], index: 9, kind: output, shape index: {}]
  %s10 = sld [smem:[#allocation0]]
  $region46: #{net1_forward.1} parent=0
    _
  %s12 = ssub.s32 1, %s10
  %s13 = scalar_select 0, %s12, %s10
  // Predicated region
  $region2: #{net1_forward.1} parent=0 // pred_check
    _
  $region3: #{net1_forward.1} parent=0 // pred_check_branch
    %15 = sbr.rel (0) target = $region5
  $region4: #{net1_forward.1} parent=0 // pred_region
    _
  $region5: #{net1_forward.1} parent=0 // pred_fallthru
    _
  // Predicated region
  $region6: #{net1_forward.1} parent=0 // pred_check
    _
  $region7: #{net1_forward.1} parent=0 // pred_check_branch
    %17 = sbr.rel (0) target = $region9
  $region8: #{net1_forward.1} parent=0 // pred_region
    _
  $region9: #{net1_forward.1} parent=0 // pred_fallthru
    _
  // Predicated region
  $region10: #{net1_forward.1} parent=0 // pred_check
    _
  $region11: #{net1_forward.1} parent=0 // pred_check_branch
    %19 = sbr.rel (0) target = $region13
  $region12: #{net1_forward.1} parent=0 // pred_region
    _
  $region13: #{net1_forward.1} parent=0 // pred_fallthru
    _
  // Predicated region
  $region14: #{net1_forward.1} parent=0 // pred_check
    _
  $region15: #{net1_forward.1} parent=0 // pred_check_branch
    %21 = sbr.rel (0) target = $region17
  $region16: #{net1_forward.1} parent=0 // pred_region
    _
  $region17: #{net1_forward.1} parent=0 // pred_fallthru
    _
  // Predicated region
  $region18: #{net1_forward.1} parent=0 // pred_check
    _
  $region19: #{net1_forward.1} parent=0 // pred_check_branch
    %23 = sbr.rel (0) target = $region21
  $region20: #{net1_forward.1} parent=0 // pred_region
    _
  $region21: #{net1_forward.1} parent=0 // pred_fallthru
    _
  // Predicated region
  $region22: #{net1_forward.1} parent=0 // pred_check
    _
  $region23: #{net1_forward.1} parent=0 // pred_check_branch
    %25 = sbr.rel (0) target = $region25
  $region24: #{net1_forward.1} parent=0 // pred_region
    _
  $region25: #{net1_forward.1} parent=0 // pred_fallthru
    _
  // Predicated region
  $region26: #{net1_forward.1} parent=0 // pred_check
    _
  $region27: #{net1_forward.1} parent=0 // pred_check_branch
    %27 = sbr.rel (0) target = $region29
  $region28: #{net1_forward.1} parent=0 // pred_region
    _
  $region29: #{net1_forward.1} parent=0 // pred_fallthru
    _
  // Predicated region
  $region30: #{net1_forward.1} parent=0 // pred_check
    _
  $region31: #{net1_forward.1} parent=0 // pred_check_branch
    %29 = sbr.rel (0) target = $region33
  $region32: #{net1_forward.1} parent=0 // pred_region
    _
  $region33: #{net1_forward.1} parent=0 // pred_fallthru
    _
  // Predicated region
  $region34: #{net1_forward.1} parent=0 // pred_check
    _
  $region35: #{net1_forward.1} parent=0 // pred_check_branch
    %31 = sbr.rel (0) target = $region37
  $region36: #{net1_forward.1} parent=0 // pred_region
    _
  $region37: #{net1_forward.1} parent=0 // pred_fallthru
    _
  %v33 = vld [vmem:[%s0] sm:$0xff]
  %v34 = vld [vmem:[%s0 + $0x8] sm:$0xff]
  %v35 = vld [vmem:[%s0 + $0x10] sm:$0xff]
  %v36 = vld [vmem:[%s0 + $0x18] sm:$0xf]
  %v37 = vld [vmem:[%s1] sm:$0xf]
  %v38 = vld [vmem:[%s1 + $0x4] sm:$0xf]
  %v39 = vld [vmem:[%s1 + $0x8] sm:$0xf]
  %v40 = vld [vmem:[%s1 + $0xc] sm:$0xf]
  %v41 = vld [vmem:[%s1 + $0x10] sm:$0xf]
  %v42 = vld [vmem:[%s1 + $0x14] sm:$0xf]
  %v43 = vld [vmem:[%s1 + $0x18] sm:$0xf]
  %v44 = vld [vmem:[%s1 + $0x1c] sm:$0xf]
  %v45 = vld [vmem:[%s1 + $0x20] sm:$0xf]
  %v46 = vld [vmem:[%s1 + $0x24] sm:$0xf]
  %v47 = vld [vmem:[%s1 + $0x28] sm:$0xf]
  %v48 = vld [vmem:[%s1 + $0x2c] sm:$0xf]
  %v49 = vld [vmem:[%s1 + $0x30] sm:$0xf]
  %v50 = vld [vmem:[%s1 + $0x34] sm:$0xf]
  %v51 = vld [vmem:[%s1 + $0x38] sm:$0xf]
  %v52 = vld [vmem:[%s1 + $0x3c] sm:$0xf]
  %v53 = vld [vmem:[%s1 + $0x40] sm:$0xf]
  %v54 = vld [vmem:[%s1 + $0x44] sm:$0xf]
  %v55 = vld [vmem:[%s1 + $0x48] sm:$0xf]
  %v56 = vld [vmem:[%s1 + $0x4c] sm:$0xf]
  %v57 = vld [vmem:[%s1 + $0x50] sm:$0xf]
  %v58 = vld [vmem:[%s1 + $0x54] sm:$0xf]
  %v59 = vld [vmem:[%s1 + $0x58] sm:$0xf]
  %v60 = vld [vmem:[%s1 + $0x5c] sm:$0xf]
  %v61 = vld [vmem:[%s1 + $0x60] sm:$0xf]
  %v62 = vld [vmem:[%s1 + $0x64] sm:$0xf]
  %v63 = vld [vmem:[%s1 + $0x68] sm:$0xf]
  %v64 = vld [vmem:[%s1 + $0x6c] sm:$0xf]
  %v65 = vld [vmem:[%s1 + $0x70] sm:$0xf]
  %v66 = vld [vmem:[%s1 + $0x74] sm:$0xf]
  %v67 = vld [vmem:[%s1 + $0x78] sm:$0xf]
  %v68 = vld [vmem:[%s1 + $0x7c] sm:$0xf]
  %v69 = vld [vmem:[%s1 + $0x80] sm:$0xf]
  %v70 = vld [vmem:[%s1 + $0x84] sm:$0xf]
  %v71 = vld [vmem:[%s1 + $0x88] sm:$0xf]
  %v72 = vld [vmem:[%s1 + $0x8c] sm:$0xf]
  %v73 = vld [vmem:[%s1 + $0x90] sm:$0xf]
  %v74 = vld [vmem:[%s1 + $0x94] sm:$0xf]
  %v75 = vld [vmem:[%s1 + $0x98] sm:$0xf]
  %v76 = vld [vmem:[%s1 + $0x9c] sm:$0xf]
  %v77 = vld [vmem:[%s1 + $0xa0] sm:$0xf]
  %v78 = vld [vmem:[%s1 + $0xa4] sm:$0xf]
  %v79 = vld [vmem:[%s1 + $0xa8] sm:$0xf]
  %v80 = vld [vmem:[%s1 + $0xac] sm:$0xf]
  %v81 = vld [vmem:[%s1 + $0xb0] sm:$0xf]
  %v82 = vld [vmem:[%s1 + $0xb4] sm:$0xf]
  %v83 = vld [vmem:[%s1 + $0xb8] sm:$0xf]
  %v84 = vld [vmem:[%s1 + $0xbc] sm:$0xf]
  %v85 = vld [vmem:[%s1 + $0xc0] sm:$0xf]
  %v86 = vld [vmem:[%s1 + $0xc4] sm:$0xf]
  %v87 = vld [vmem:[%s1 + $0xc8] sm:$0xf]
  %v88 = vld [vmem:[%s1 + $0xcc] sm:$0xf]
  %v89 = vld [vmem:[%s1 + $0xd0] sm:$0xf]
  %v90 = vld [vmem:[%s1 + $0xd4] sm:$0xf]
  %v91 = vld [vmem:[%s1 + $0xd8] sm:$0xf]
  %v92 = vld [vmem:[%s1 + $0xdc] sm:$0xf]
  %v93 = vld [vmem:[%s1 + $0xe0] sm:$0xf]
  %v94 = vld [vmem:[%s1 + $0xe4] sm:$0xf]
  %v95 = vld [vmem:[%s1 + $0xe8] sm:$0xf]
  %v96 = vld [vmem:[%s1 + $0xec] sm:$0xf]
  %v97 = vld [vmem:[%s1 + $0xf0] sm:$0xf]
  %v98 = vld [vmem:[%s1 + $0xf4] sm:$0xf]
  %v99 = vld [vmem:[%s1 + $0xf8] sm:$0xf]
  %v100 = vld [vmem:[%s1 + $0xfc] sm:$0xf]
  %v101 = vld [vmem:[%s1 + $0x100] sm:$0xf]
  %v102 = vld [vmem:[%s1 + $0x104] sm:$0xf]
  %v103 = vld [vmem:[%s1 + $0x108] sm:$0xf]
  %v104 = vld [vmem:[%s1 + $0x10c] sm:$0xf]
  %v105 = vld [vmem:[%s1 + $0x110] sm:$0xf]
  %v106 = vld [vmem:[%s1 + $0x114] sm:$0xf]
  %v107 = vld [vmem:[%s1 + $0x118] sm:$0xf]
  %v108 = vld [vmem:[%s1 + $0x11c] sm:$0xf]
  %v109 = vld [vmem:[%s1 + $0x120] sm:$0xf]
  %v110 = vld [vmem:[%s1 + $0x124] sm:$0xf]
  %v111 = vld [vmem:[%s1 + $0x128] sm:$0xf]
  %v112 = vld [vmem:[%s1 + $0x12c] sm:$0xf]
  %v113 = vld [vmem:[%s1 + $0x130] sm:$0xf]
  %v114 = vld [vmem:[%s1 + $0x134] sm:$0xf]
  %v115 = vld [vmem:[%s1 + $0x138] sm:$0xf]
  %v116 = vld [vmem:[%s1 + $0x13c] sm:$0xf]
  %v117 = vld [vmem:[%s1 + $0x140] sm:$0xf]
  %v118 = vld [vmem:[%s1 + $0x144] sm:$0xf]
  %v119 = vld [vmem:[%s1 + $0x148] sm:$0xf]
  %v120 = vld [vmem:[%s1 + $0x14c] sm:$0xf]
  %v121 = vld [vmem:[%s1 + $0x150] sm:$0xf]
  %v122 = vld [vmem:[%s1 + $0x154] sm:$0xf]
  %v123 = vld [vmem:[%s1 + $0x158] sm:$0xf]
  %v124 = vld [vmem:[%s1 + $0x15c] sm:$0xf]
  %v125 = vld [vmem:[%s1 + $0x160] sm:$0xf]
  %v126 = vld [vmem:[%s1 + $0x164] sm:$0xf]
  %v127 = vld [vmem:[%s1 + $0x168] sm:$0xf]
  %v128 = vld [vmem:[%s1 + $0x16c] sm:$0xf]
  %v129 = vld [vmem:[%s1 + $0x170] sm:$0xf]
  %v130 = vld [vmem:[%s1 + $0x174] sm:$0xf]
  %v131 = vld [vmem:[%s1 + $0x178] sm:$0xf]
  %v132 = vld [vmem:[%s1 + $0x17c] sm:$0xf]
  %v133 = vld [vmem:[%s1 + $0x180] sm:$0xf]
  %v134 = vld [vmem:[%s1 + $0x184] sm:$0xf]
  %v135 = vld [vmem:[%s2] sm:$0x1]
  %v137 = vlaneseq
  %v138 = vshrl.u32 %v137, 7
  %v139 = vsub.s32 0, %v138
  %v140 = vrot.slane %v135, %v139
  %v146 = vunpack.c.l.b16 %v33
  %v147 = vunpack.c.h.b16 %v33
  %v148 = vunpack.c.l.b16 %v34
  %v149 = vunpack.c.h.b16 %v34
  %v150 = vunpack.c.l.b16 %v35
  %v151 = vunpack.c.h.b16 %v35
  %v152 = vunpack.c.l.b16 %v36
  %v153 = vpack.c.b16 %v146, %v146
  %v154 = vpack.c.b16 %v147, %v147
  %v155 = vpack.c.b16 %v148, %v148
  %v156 = vpack.c.b16 %v149, %v149
  %v157 = vpack.c.b16 %v150, %v150
  %v158 = vpack.c.b16 %v151, %v151
  %v159 = vpack.c.b16 %v152, %v152
  %v264 = vunpack.c.l.b16 %v37
  %v265 = vunpack.c.l.b16 %v38
  %v266 = vunpack.c.l.b16 %v39
  %v267 = vunpack.c.l.b16 %v40
  %v268 = vunpack.c.l.b16 %v41
  %v269 = vunpack.c.l.b16 %v42
  %v270 = vunpack.c.l.b16 %v43
  %v271 = vunpack.c.l.b16 %v44
  %v272 = vunpack.c.l.b16 %v45
  %v273 = vunpack.c.l.b16 %v46
  %v274 = vunpack.c.l.b16 %v47
  %v275 = vunpack.c.l.b16 %v48
  %v276 = vunpack.c.l.b16 %v49
  %v277 = vunpack.c.l.b16 %v50
  %v278 = vunpack.c.l.b16 %v51
  %v279 = vunpack.c.l.b16 %v52
  %v280 = vunpack.c.l.b16 %v53
  %v281 = vunpack.c.l.b16 %v54
  %v282 = vunpack.c.l.b16 %v55
  %v283 = vunpack.c.l.b16 %v56
  %v284 = vunpack.c.l.b16 %v57
  %v285 = vunpack.c.l.b16 %v58
  %v286 = vunpack.c.l.b16 %v59
  %v287 = vunpack.c.l.b16 %v60
  %v288 = vunpack.c.l.b16 %v61
  %v289 = vunpack.c.l.b16 %v62
  %v290 = vunpack.c.l.b16 %v63
  %v291 = vunpack.c.l.b16 %v64
  %v292 = vunpack.c.l.b16 %v65
  %v293 = vunpack.c.l.b16 %v66
  %v294 = vunpack.c.l.b16 %v67
  %v295 = vunpack.c.l.b16 %v68
  %v296 = vunpack.c.l.b16 %v69
  %v297 = vunpack.c.l.b16 %v70
  %v298 = vunpack.c.l.b16 %v71
  %v299 = vunpack.c.l.b16 %v72
  %v300 = vunpack.c.l.b16 %v73
  %v301 = vunpack.c.l.b16 %v74
  %v302 = vunpack.c.l.b16 %v75
  %v303 = vunpack.c.l.b16 %v76
  %v304 = vunpack.c.l.b16 %v77
  %v305 = vunpack.c.l.b16 %v78
  %v306 = vunpack.c.l.b16 %v79
  %v307 = vunpack.c.l.b16 %v80
  %v308 = vunpack.c.l.b16 %v81
  %v309 = vunpack.c.l.b16 %v82
  %v310 = vunpack.c.l.b16 %v83
  %v311 = vunpack.c.l.b16 %v84
  %v312 = vunpack.c.l.b16 %v85
  %v313 = vunpack.c.l.b16 %v86
  %v314 = vunpack.c.l.b16 %v87
  %v315 = vunpack.c.l.b16 %v88
  %v316 = vunpack.c.l.b16 %v89
  %v317 = vunpack.c.l.b16 %v90
  %v318 = vunpack.c.l.b16 %v91
  %v319 = vunpack.c.l.b16 %v92
  %v320 = vunpack.c.l.b16 %v93
  %v321 = vunpack.c.l.b16 %v94
  %v322 = vunpack.c.l.b16 %v95
  %v323 = vunpack.c.l.b16 %v96
  %v324 = vunpack.c.l.b16 %v97
  %v325 = vunpack.c.l.b16 %v98
  %v326 = vunpack.c.l.b16 %v99
  %v327 = vunpack.c.l.b16 %v100
  %v328 = vunpack.c.l.b16 %v101
  %v329 = vunpack.c.l.b16 %v102
  %v330 = vunpack.c.l.b16 %v103
  %v331 = vunpack.c.l.b16 %v104
  %v332 = vunpack.c.l.b16 %v105
  %v333 = vunpack.c.l.b16 %v106
  %v334 = vunpack.c.l.b16 %v107
  %v335 = vunpack.c.l.b16 %v108
  %v336 = vunpack.c.l.b16 %v109
  %v337 = vunpack.c.l.b16 %v110
  %v338 = vunpack.c.l.b16 %v111
  %v339 = vunpack.c.l.b16 %v112
  %v340 = vunpack.c.l.b16 %v113
  %v341 = vunpack.c.l.b16 %v114
  %v342 = vunpack.c.l.b16 %v115
  %v343 = vunpack.c.l.b16 %v116
  %v344 = vunpack.c.l.b16 %v117
  %v345 = vunpack.c.l.b16 %v118
  %v346 = vunpack.c.l.b16 %v119
  %v347 = vunpack.c.l.b16 %v120
  %v348 = vunpack.c.l.b16 %v121
  %v349 = vunpack.c.l.b16 %v122
  %v350 = vunpack.c.l.b16 %v123
  %v351 = vunpack.c.l.b16 %v124
  %v352 = vunpack.c.l.b16 %v125
  %v353 = vunpack.c.l.b16 %v126
  %v354 = vunpack.c.l.b16 %v127
  %v355 = vunpack.c.l.b16 %v128
  %v356 = vunpack.c.l.b16 %v129
  %v357 = vunpack.c.l.b16 %v130
  %v358 = vunpack.c.l.b16 %v131
  %v359 = vunpack.c.l.b16 %v132
  %v360 = vunpack.c.l.b16 %v133
  %v361 = vunpack.c.l.b16 %v134
  %v362 = vpack.c.b16 %v265, %v264
  %v363 = vpack.c.b16 %v267, %v266
  %v364 = vpack.c.b16 %v269, %v268
  %v365 = vpack.c.b16 %v271, %v270
  %v366 = vpack.c.b16 %v273, %v272
  %v367 = vpack.c.b16 %v275, %v274
  %v368 = vpack.c.b16 %v277, %v276
  %v369 = vpack.c.b16 %v279, %v278
  %v370 = vpack.c.b16 %v281, %v280
  %v371 = vpack.c.b16 %v283, %v282
  %v372 = vpack.c.b16 %v285, %v284
  %v373 = vpack.c.b16 %v287, %v286
  %v374 = vpack.c.b16 %v289, %v288
  %v375 = vpack.c.b16 %v291, %v290
  %v376 = vpack.c.b16 %v293, %v292
  %v377 = vpack.c.b16 %v295, %v294
  %v378 = vpack.c.b16 %v297, %v296
  %v379 = vpack.c.b16 %v299, %v298
  %v380 = vpack.c.b16 %v301, %v300
  %v381 = vpack.c.b16 %v303, %v302
  %v382 = vpack.c.b16 %v305, %v304
  %v383 = vpack.c.b16 %v307, %v306
  %v384 = vpack.c.b16 %v309, %v308
  %v385 = vpack.c.b16 %v311, %v310
  %v386 = vpack.c.b16 %v313, %v312
  %v387 = vpack.c.b16 %v315, %v314
  %v388 = vpack.c.b16 %v317, %v316
  %v389 = vpack.c.b16 %v319, %v318
  %v390 = vpack.c.b16 %v321, %v320
  %v391 = vpack.c.b16 %v323, %v322
  %v392 = vpack.c.b16 %v325, %v324
  %v393 = vpack.c.b16 %v327, %v326
  %v394 = vpack.c.b16 %v329, %v328
  %v395 = vpack.c.b16 %v331, %v330
  %v396 = vpack.c.b16 %v333, %v332
  %v397 = vpack.c.b16 %v335, %v334
  %v398 = vpack.c.b16 %v337, %v336
  %v399 = vpack.c.b16 %v339, %v338
  %v400 = vpack.c.b16 %v341, %v340
  %v401 = vpack.c.b16 %v343, %v342
  %v402 = vpack.c.b16 %v345, %v344
  %v403 = vpack.c.b16 %v347, %v346
  %v404 = vpack.c.b16 %v349, %v348
  %v405 = vpack.c.b16 %v351, %v350
  %v406 = vpack.c.b16 %v353, %v352
  %v407 = vpack.c.b16 %v355, %v354
  %v408 = vpack.c.b16 %v357, %v356
  %v409 = vpack.c.b16 %v359, %v358
  %v410 = vpack.c.b16 %v361, %v360
  %vm460 = vcmask 130048
  %v462 = vsel %vm460, %v159, 0
  %464 = vmatprep.subr.bf16.mxu0 0
  %465 = vmatpush1.bf16.msra.mxu0 %v369
  %466 = vmatprep.subr.bf16.mxu0 0
  %467 = vmatpush1.bf16.msra.mxu0 %v368
  %468 = vmatprep.subr.bf16.mxu0 0
  %469 = vmatpush1.bf16.msra.mxu0 %v367
  %470 = vmatprep.subr.bf16.mxu0 0
  %471 = vmatpush1.bf16.msra.mxu0 %v366
  %472 = vmatprep.subr.bf16.mxu0 0
  %473 = vmatpush1.bf16.msra.mxu0 %v365
  %474 = vmatprep.subr.bf16.mxu0 0
  %475 = vmatpush1.bf16.msra.mxu0 %v364
  %476 = vmatprep.subr.bf16.mxu0 0
  %477 = vmatpush1.bf16.msra.mxu0 %v363
  %478 = vmatprep.subr.bf16.mxu0 0
  %479 = vmatpush1.bf16.msra.mxu0 %v362
  %480 = vmatprep.subr.bf16.mxu0 0
  %481 = vmatpush2.bf16.msra.mxu0 %v377
  %482 = vmatprep.subr.bf16.mxu0 0
  %483 = vmatpush2.bf16.msra.mxu0 %v376
  %484 = vmatprep.subr.bf16.mxu0 0
  %485 = vmatpush2.bf16.msra.mxu0 %v375
  %486 = vmatprep.subr.bf16.mxu0 0
  %487 = vmatpush2.bf16.msra.mxu0 %v374
  %488 = vmatprep.subr.bf16.mxu0 0
  %489 = vmatpush2.bf16.msra.mxu0 %v373
  %490 = vmatprep.subr.bf16.mxu0 0
  %491 = vmatpush2.bf16.msra.mxu0 %v372
  %492 = vmatprep.subr.bf16.mxu0 0
  %493 = vmatpush2.bf16.msra.mxu0 %v371
  %494 = vmatprep.subr.bf16.mxu0 0
  %495 = vmatpush2.bf16.msra.mxu0 %v370
  %496 = vmatprep.mubr.bf16.mxu0 %v154
  %497 = vmatmul.mubr.bf16.gmra.mxu0 %v153
  %v498 = vpop.f32.mrf.mxu0
  %v499 = vadd.f32 %v140, %v498
  %v500 = vpop.f32.mrf.mxu0
  %v501 = vpop.f32.mrf.mxu0
  %v502 = vpop.f32.mrf.mxu0
  %503 = vdwg.mxu0
  %504 = vmatprep.subr.bf16.mxu0 0
  %505 = vmatpush1.bf16.msra.mxu0 %v385
  %506 = vmatprep.subr.bf16.mxu0 0
  %507 = vmatpush1.bf16.msra.mxu0 %v384
  %508 = vmatprep.subr.bf16.mxu0 0
  %509 = vmatpush1.bf16.msra.mxu0 %v383
  %510 = vmatprep.subr.bf16.mxu0 0
  %511 = vmatpush1.bf16.msra.mxu0 %v382
  %512 = vmatprep.subr.bf16.mxu0 0
  %513 = vmatpush1.bf16.msra.mxu0 %v381
  %514 = vmatprep.subr.bf16.mxu0 0
  %515 = vmatpush1.bf16.msra.mxu0 %v380
  %516 = vmatprep.subr.bf16.mxu0 0
  %517 = vmatpush1.bf16.msra.mxu0 %v379
  %518 = vmatprep.subr.bf16.mxu0 0
  %519 = vmatpush1.bf16.msra.mxu0 %v378
  %520 = vmatprep.subr.bf16.mxu0 0
  %521 = vmatpush2.bf16.msra.mxu0 %v393
  %522 = vmatprep.subr.bf16.mxu0 0
  %523 = vmatpush2.bf16.msra.mxu0 %v392
  %524 = vmatprep.subr.bf16.mxu0 0
  %525 = vmatpush2.bf16.msra.mxu0 %v391
  %526 = vmatprep.subr.bf16.mxu0 0
  %527 = vmatpush2.bf16.msra.mxu0 %v390
  %528 = vmatprep.subr.bf16.mxu0 0
  %529 = vmatpush2.bf16.msra.mxu0 %v389
  %530 = vmatprep.subr.bf16.mxu0 0
  %531 = vmatpush2.bf16.msra.mxu0 %v388
  %532 = vmatprep.subr.bf16.mxu0 0
  %533 = vmatpush2.bf16.msra.mxu0 %v387
  %534 = vmatprep.subr.bf16.mxu0 0
  %535 = vmatpush2.bf16.msra.mxu0 %v386
  %536 = vmatprep.mubr.bf16.mxu0 %v156
  %537 = vmatmul.mubr.bf16.gmra.mxu0 %v155
  %v538 = vpop.f32.mrf.mxu0
  %v539 = vadd.f32 %v499, %v538
  %v540 = vpop.f32.mrf.mxu0
  %v541 = vpop.f32.mrf.mxu0
  %v542 = vpop.f32.mrf.mxu0
  %543 = vdwg.mxu0
  %544 = vmatprep.subr.bf16.mxu0 0
  %545 = vmatpush1.bf16.msra.mxu0 %v401
  %546 = vmatprep.subr.bf16.mxu0 0
  %547 = vmatpush1.bf16.msra.mxu0 %v400
  %548 = vmatprep.subr.bf16.mxu0 0
  %549 = vmatpush1.bf16.msra.mxu0 %v399
  %550 = vmatprep.subr.bf16.mxu0 0
  %551 = vmatpush1.bf16.msra.mxu0 %v398
  %552 = vmatprep.subr.bf16.mxu0 0
  %553 = vmatpush1.bf16.msra.mxu0 %v397
  %554 = vmatprep.subr.bf16.mxu0 0
  %555 = vmatpush1.bf16.msra.mxu0 %v396
  %556 = vmatprep.subr.bf16.mxu0 0
  %557 = vmatpush1.bf16.msra.mxu0 %v395
  %558 = vmatprep.subr.bf16.mxu0 0
  %559 = vmatpush1.bf16.msra.mxu0 %v394
  %560 = vmatprep.subr.bf16.mxu0 0
  %561 = vmatpush2.bf16.msra.mxu0 %v409
  %562 = vmatprep.subr.bf16.mxu0 0
  %563 = vmatpush2.bf16.msra.mxu0 %v408
  %564 = vmatprep.subr.bf16.mxu0 0
  %565 = vmatpush2.bf16.msra.mxu0 %v407
  %566 = vmatprep.subr.bf16.mxu0 0
  %567 = vmatpush2.bf16.msra.mxu0 %v406
  %568 = vmatprep.subr.bf16.mxu0 0
  %569 = vmatpush2.bf16.msra.mxu0 %v405
  %570 = vmatprep.subr.bf16.mxu0 0
  %571 = vmatpush2.bf16.msra.mxu0 %v404
  %572 = vmatprep.subr.bf16.mxu0 0
  %573 = vmatpush2.bf16.msra.mxu0 %v403
  %574 = vmatprep.subr.bf16.mxu0 0
  %575 = vmatpush2.bf16.msra.mxu0 %v402
  %576 = vmatprep.mubr.bf16.mxu0 %v158
  %577 = vmatmul.mubr.bf16.gmra.mxu0 %v157
  %v578 = vpop.f32.mrf.mxu0
  %v579 = vadd.f32 %v539, %v578
  %v580 = vpop.f32.mrf.mxu0
  %v581 = vpop.f32.mrf.mxu0
  %v582 = vpop.f32.mrf.mxu0
  %583 = vdwg.mxu0
  %584 = vmatprep.subr.bf16.mxu0 0
  %585 = vmatpush1.bf16.msra.mxu0 0
  %586 = vmatprep.subr.bf16.mxu0 0
  %587 = vmatpush1.bf16.msra.mxu0 0
  %588 = vmatprep.subr.bf16.mxu0 0
  %589 = vmatpush1.bf16.msra.mxu0 0
  %590 = vmatprep.subr.bf16.mxu0 0
  %591 = vmatpush1.bf16.msra.mxu0 0
  %592 = vmatprep.subr.bf16.mxu0 0
  %593 = vmatpush1.bf16.msra.mxu0 0
  %594 = vmatprep.subr.bf16.mxu0 0
  %595 = vmatpush1.bf16.msra.mxu0 0
  %596 = vmatprep.subr.bf16.mxu0 0
  %597 = vmatpush1.bf16.msra.mxu0 0
  %598 = vmatprep.subr.bf16.mxu0 0
  %599 = vmatpush1.bf16.msra.mxu0 %v410
  %600 = vmatprep.subr.bf16.mxu0 0
  %601 = vmatpush2.bf16.msra.mxu0 0
  %602 = vmatprep.subr.bf16.mxu0 0
  %603 = vmatpush2.bf16.msra.mxu0 0
  %604 = vmatprep.subr.bf16.mxu0 0
  %605 = vmatpush2.bf16.msra.mxu0 0
  %606 = vmatprep.subr.bf16.mxu0 0
  %607 = vmatpush2.bf16.msra.mxu0 0
  %608 = vmatprep.subr.bf16.mxu0 0
  %609 = vmatpush2.bf16.msra.mxu0 0
  %610 = vmatprep.subr.bf16.mxu0 0
  %611 = vmatpush2.bf16.msra.mxu0 0
  %612 = vmatprep.subr.bf16.mxu0 0
  %613 = vmatpush2.bf16.msra.mxu0 0
  %614 = vmatprep.subr.bf16.mxu0 0
  %615 = vmatpush2.bf16.msra.mxu0 0
  %616 = vmatprep.mubr.bf16.mxu0 0
  %617 = vmatmul.mubr.bf16.gmra.mxu0 %v462
  %v618 = vpop.f32.mrf.mxu0
  %v619 = vadd.f32 %v579, %v618
  %v620 = vpop.f32.mrf.mxu0
  %v621 = vpop.f32.mrf.mxu0
  %v622 = vpop.f32.mrf.mxu0
  %623 = vdwg.mxu0
  %v624 = vmax.f32 %v619, 0.0
  %v625 = vpack.c.bf16 %v624, %v624
  %v626 = vld [vmem:[%s3] sm:$0xf]
  %v627 = vld [vmem:[%s3 + $0x4] sm:$0xf]
  %v628 = vld [vmem:[%s3 + $0x8] sm:$0xf]
  %v629 = vld [vmem:[%s3 + $0xc] sm:$0xf]
  %v630 = vld [vmem:[%s3 + $0x10] sm:$0xf]
  %v631 = vld [vmem:[%s3 + $0x14] sm:$0xf]
  %v632 = vld [vmem:[%s3 + $0x18] sm:$0xf]
  %v633 = vld [vmem:[%s3 + $0x1c] sm:$0xf]
  %v634 = vld [vmem:[%s3 + $0x20] sm:$0xf]
  %v635 = vld [vmem:[%s3 + $0x24] sm:$0xf]
  %v636 = vld [vmem:[%s3 + $0x28] sm:$0xf]
  %v637 = vld [vmem:[%s3 + $0x2c] sm:$0xf]
  %v638 = vld [vmem:[%s3 + $0x30] sm:$0xf]
  %v639 = vld [vmem:[%s3 + $0x34] sm:$0xf]
  %v640 = vld [vmem:[%s3 + $0x38] sm:$0xf]
  %v641 = vld [vmem:[%s3 + $0x3c] sm:$0xf]
  %v642 = vld [vmem:[%s4] sm:$0x1]
  %v644 = vlaneseq
  %v645 = vshrl.u32 %v644, 7
  %v646 = vsub.s32 0, %v645
  %v647 = vrot.slane %v642, %v646
  %v665 = vunpack.c.l.b16 %v626
  %v666 = vunpack.c.l.b16 %v627
  %v667 = vunpack.c.l.b16 %v628
  %v668 = vunpack.c.l.b16 %v629
  %v669 = vunpack.c.l.b16 %v630
  %v670 = vunpack.c.l.b16 %v631
  %v671 = vunpack.c.l.b16 %v632
  %v672 = vunpack.c.l.b16 %v633
  %v673 = vunpack.c.l.b16 %v634
  %v674 = vunpack.c.l.b16 %v635
  %v675 = vunpack.c.l.b16 %v636
  %v676 = vunpack.c.l.b16 %v637
  %v677 = vunpack.c.l.b16 %v638
  %v678 = vunpack.c.l.b16 %v639
  %v679 = vunpack.c.l.b16 %v640
  %v680 = vunpack.c.l.b16 %v641
  %v681 = vpack.c.b16 %v666, %v665
  %v682 = vpack.c.b16 %v668, %v667
  %v683 = vpack.c.b16 %v670, %v669
  %v684 = vpack.c.b16 %v672, %v671
  %v685 = vpack.c.b16 %v674, %v673
  %v686 = vpack.c.b16 %v676, %v675
  %v687 = vpack.c.b16 %v678, %v677
  %v688 = vpack.c.b16 %v680, %v679
  %697 = vmatprep.subr.bf16.mxu0 0
  %698 = vmatpush1.bf16.msra.mxu0 %v688
  %699 = vmatprep.subr.bf16.mxu0 0
  %700 = vmatpush1.bf16.msra.mxu0 %v687
  %701 = vmatprep.subr.bf16.mxu0 0
  %702 = vmatpush1.bf16.msra.mxu0 %v686
  %703 = vmatprep.subr.bf16.mxu0 0
  %704 = vmatpush1.bf16.msra.mxu0 %v685
  %705 = vmatprep.subr.bf16.mxu0 0
  %706 = vmatpush1.bf16.msra.mxu0 %v684
  %707 = vmatprep.subr.bf16.mxu0 0
  %708 = vmatpush1.bf16.msra.mxu0 %v683
  %709 = vmatprep.subr.bf16.mxu0 0
  %710 = vmatpush1.bf16.msra.mxu0 %v682
  %711 = vmatprep.subr.bf16.mxu0 0
  %712 = vmatpush1.bf16.msra.mxu0 %v681
  %713 = vmatprep.subr.bf16.mxu0 0
  %714 = vmatpush2.bf16.msra.mxu0 0
  %715 = vmatprep.subr.bf16.mxu0 0
  %716 = vmatpush2.bf16.msra.mxu0 0
  %717 = vmatprep.subr.bf16.mxu0 0
  %718 = vmatpush2.bf16.msra.mxu0 0
  %719 = vmatprep.subr.bf16.mxu0 0
  %720 = vmatpush2.bf16.msra.mxu0 0
  %721 = vmatprep.subr.bf16.mxu0 0
  %722 = vmatpush2.bf16.msra.mxu0 0
  %723 = vmatprep.subr.bf16.mxu0 0
  %724 = vmatpush2.bf16.msra.mxu0 0
  %725 = vmatprep.subr.bf16.mxu0 0
  %726 = vmatpush2.bf16.msra.mxu0 0
  %727 = vmatprep.subr.bf16.mxu0 0
  %728 = vmatpush2.bf16.msra.mxu0 0
  %729 = vmatprep.mubr.bf16.mxu0 0
  %730 = vmatmul.mubr.bf16.gmra.mxu0 %v625
  %v731 = vpop.f32.mrf.mxu0
  %v732 = vadd.f32 %v647, %v731
  %v733 = vpop.f32.mrf.mxu0
  %v734 = vpop.f32.mrf.mxu0
  %v735 = vpop.f32.mrf.mxu0
  %736 = vdwg.mxu0
  %v737 = vmax.f32 %v732, 0.0
  %v738 = vpack.c.bf16 %v737, %v737
  %v739 = vld [vmem:[%s5] sm:$0xf]
  %v740 = vld [vmem:[%s5 + $0x4] sm:$0xf]
  %v741 = vld [vmem:[%s5 + $0x8] sm:$0xf]
  %v742 = vld [vmem:[%s5 + $0xc] sm:$0xf]
  %v743 = vld [vmem:[%s5 + $0x10] sm:$0xf]
  %v744 = vld [vmem:[%s5 + $0x14] sm:$0xf]
  %v745 = vld [vmem:[%s5 + $0x18] sm:$0xf]
  %v746 = vld [vmem:[%s5 + $0x1c] sm:$0xf]
  %v747 = vld [vmem:[%s6] sm:$0x1]
  %v749 = vlaneseq
  %v750 = vshrl.u32 %v749, 7
  %v751 = vsub.s32 0, %v750
  %v752 = vrot.slane %v747, %v751
  %v762 = vunpack.c.l.b16 %v739
  %v763 = vunpack.c.l.b16 %v740
  %v764 = vunpack.c.l.b16 %v741
  %v765 = vunpack.c.l.b16 %v742
  %v766 = vunpack.c.l.b16 %v743
  %v767 = vunpack.c.l.b16 %v744
  %v768 = vunpack.c.l.b16 %v745
  %v769 = vunpack.c.l.b16 %v746
  %v770 = vpack.c.b16 %v763, %v762
  %v771 = vpack.c.b16 %v765, %v764
  %v772 = vpack.c.b16 %v767, %v766
  %v773 = vpack.c.b16 %v769, %v768
  %vm778 = vcmask 523264
  %v780 = vsel %vm778, %v738, 0
  %782 = vmatprep.subr.bf16.mxu0 0
  %783 = vmatpush1.bf16.msra.mxu0 0
  %784 = vmatprep.subr.bf16.mxu0 0
  %785 = vmatpush1.bf16.msra.mxu0 0
  %786 = vmatprep.subr.bf16.mxu0 0
  %787 = vmatpush1.bf16.msra.mxu0 0
  %788 = vmatprep.subr.bf16.mxu0 0
  %789 = vmatpush1.bf16.msra.mxu0 0
  %790 = vmatprep.subr.bf16.mxu0 0
  %791 = vmatpush1.bf16.msra.mxu0 %v773
  %792 = vmatprep.subr.bf16.mxu0 0
  %793 = vmatpush1.bf16.msra.mxu0 %v772
  %794 = vmatprep.subr.bf16.mxu0 0
  %795 = vmatpush1.bf16.msra.mxu0 %v771
  %796 = vmatprep.subr.bf16.mxu0 0
  %797 = vmatpush1.bf16.msra.mxu0 %v770
  %798 = vmatprep.subr.bf16.mxu0 0
  %799 = vmatpush2.bf16.msra.mxu0 0
  %800 = vmatprep.subr.bf16.mxu0 0
  %801 = vmatpush2.bf16.msra.mxu0 0
  %802 = vmatprep.subr.bf16.mxu0 0
  %803 = vmatpush2.bf16.msra.mxu0 0
  %804 = vmatprep.subr.bf16.mxu0 0
  %805 = vmatpush2.bf16.msra.mxu0 0
  %806 = vmatprep.subr.bf16.mxu0 0
  %807 = vmatpush2.bf16.msra.mxu0 0
  %808 = vmatprep.subr.bf16.mxu0 0
  %809 = vmatpush2.bf16.msra.mxu0 0
  %810 = vmatprep.subr.bf16.mxu0 0
  %811 = vmatpush2.bf16.msra.mxu0 0
  %812 = vmatprep.subr.bf16.mxu0 0
  %813 = vmatpush2.bf16.msra.mxu0 0
  %814 = vmatprep.mubr.bf16.mxu0 0
  %815 = vmatmul.mubr.bf16.gmra.mxu0 %v780
  %v816 = vpop.f32.mrf.mxu0
  %v817 = vadd.f32 %v752, %v816
  %v818 = vpop.f32.mrf.mxu0
  %v819 = vpop.f32.mrf.mxu0
  %v820 = vpop.f32.mrf.mxu0
  %821 = vdwg.mxu0
  %v822 = vmax.f32 %v817, 0.0
  %v823 = vpack.c.bf16 %v822, %v822
  %v824 = vld [vmem:[%s7] sm:$0xf]
  %v825 = vld [vmem:[%s7 + $0x4] sm:$0xf]
  %v826 = vld [vmem:[%s8] sm:$0x1]
  %v828 = vlaneseq
  %v829 = vshrl.u32 %v828, 7
  %v830 = vsub.s32 0, %v829
  %v831 = vrot.slane %v826, %v830
  %v835 = vunpack.c.l.b16 %v824
  %v836 = vunpack.c.l.b16 %v825
  %v837 = vpack.c.b16 %v836, %v835
  %v840 = vsel %vm460, %v823, 0
  %842 = vmatprep.subr.bf16.mxu0 0
  %843 = vmatpush1.bf16.msra.mxu0 0
  %844 = vmatprep.subr.bf16.mxu0 0
  %845 = vmatpush1.bf16.msra.mxu0 0
  %846 = vmatprep.subr.bf16.mxu0 0
  %847 = vmatpush1.bf16.msra.mxu0 0
  %848 = vmatprep.subr.bf16.mxu0 0
  %849 = vmatpush1.bf16.msra.mxu0 0
  %850 = vmatprep.subr.bf16.mxu0 0
  %851 = vmatpush1.bf16.msra.mxu0 0
  %852 = vmatprep.subr.bf16.mxu0 0
  %853 = vmatpush1.bf16.msra.mxu0 0
  %854 = vmatprep.subr.bf16.mxu0 0
  %855 = vmatpush1.bf16.msra.mxu0 0
  %856 = vmatprep.subr.bf16.mxu0 0
  %857 = vmatpush1.bf16.msra.mxu0 %v837
  %858 = vmatprep.subr.bf16.mxu0 0
  %859 = vmatpush2.bf16.msra.mxu0 0
  %860 = vmatprep.subr.bf16.mxu0 0
  %861 = vmatpush2.bf16.msra.mxu0 0
  %862 = vmatprep.subr.bf16.mxu0 0
  %863 = vmatpush2.bf16.msra.mxu0 0
  %864 = vmatprep.subr.bf16.mxu0 0
  %865 = vmatpush2.bf16.msra.mxu0 0
  %866 = vmatprep.subr.bf16.mxu0 0
  %867 = vmatpush2.bf16.msra.mxu0 0
  %868 = vmatprep.subr.bf16.mxu0 0
  %869 = vmatpush2.bf16.msra.mxu0 0
  %870 = vmatprep.subr.bf16.mxu0 0
  %871 = vmatpush2.bf16.msra.mxu0 0
  %872 = vmatprep.subr.bf16.mxu0 0
  %873 = vmatpush2.bf16.msra.mxu0 0
  %874 = vmatprep.mubr.bf16.mxu0 0
  %875 = vmatmul.mubr.bf16.gmra.mxu0 %v840
  %v876 = vpop.f32.mrf.mxu0
  %v877 = vadd.f32 %v831, %v876
  %v878 = vpop.f32.mrf.mxu0
  %v879 = vpop.f32.mrf.mxu0
  %v880 = vpop.f32.mrf.mxu0
  %881 = vdwg.mxu0
  %vm882 = vcmask 80896
  %v883 = vsel %vm882, %v877, -inf
  %884 = vmax.xlane.f32.xlu0 %v883
  %v885 = vpop.xlane.xlu0 %884
  %v886 = vsub.f32 %v877, %v885
  %v887 = vmul.f32 %v886, 1.442695
  %v888 = vpow.pop %v887
  %v889 = vsel %vm882, %v888, 0.0
  %890 = vadd.xlane.f32.xlu0 %v889
  %v891 = vpop.xlane.xlu0 %890
  %v892 = vlog2.pop %v891
  %v893 = vmul.f32 %v892, 0.6931472
  %v894 = vsub.f32 %v886, %v893
  %895 = vst.msk [vmem:[%s9] sm:$0xff] %vm882, %v894
  // Predicated region
  $region38: #{net1_forward.1} parent=0 // pred_check
    _
  $region39: #{net1_forward.1} parent=0 // pred_check_branch
    %897 = sbr.rel (0) target = $region41
  $region40: #{net1_forward.1} parent=0 // pred_region
    _
  $region41: #{net1_forward.1} parent=0 // pred_fallthru
    _
  // Predicated region
  $region42: #{net1_forward.1} parent=0 // pred_check
    _
  $region43: #{net1_forward.1} parent=0 // pred_check_branch
    %899 = sbr.rel (0) target = $region45
  $region44: #{net1_forward.1} parent=0 // pred_region
    _
  $region45: #{net1_forward.1} parent=0 // pred_fallthru
    _

</llo_original>
